<compile_context>
chip_gen: v7x
topology: tpu7x:2x2x1
jax: 0.10.0
libtpu: 0.0.40
codegen_flags: <defaults>
</compile_context>

<pallas_src>
import jax
import jax.numpy as jnp
from jax.experimental import pallas as pl
from jax.experimental.pallas import tpu as pltpu

POS_TH = 0.5
NEG_TH = 0.5
VARIANCES = (0.1, 0.2)        # encode() variances
CLASS_WEIGHTS = (1.0, 4.0)    # CrossEntropyLoss(weight=[1, 4])
BOX_LOSS_WEIGHT = 1.0
CLASS_LOSS_WEIGHT = 10.0

# Rows of the packed anchor-constants operand [12, A]:
#  0..3: point form x1,y1,x2,y2 | 4: area | 5,6: cx,cy
#  7,8 : 1/(VAR0*w), 1/(VAR0*h) | 9,10: log(w)/VAR1, log(h)/VAR1 | 11: valid (1/0)


def _smooth_l1(pred, target):
    d = pred - target
    ad = jnp.abs(d)
    return jnp.where(ad < 1.0, 0.5 * d * d, ad - 0.5)


def _detection_loss_kernel(boxes_ref, labels_ref, pred_ref, anc_ref,
                           out_ref, acc_ref):
    a = pl.program_id(1)
    last_a = pl.num_programs(1) - 1

    @pl.when(a == 0)
    def _init():
        acc_ref[...] = jnp.zeros_like(acc_ref)

    boxes = boxes_ref[0]          # [N_obj, 4] gt boxes (x1,y1,x2,y2), pad = -1
    labels = labels_ref[0]        # [N_obj, 1] int32 labels, pad = -1
    pred = pred_ref[0]            # [6, TILE_A] rows 0..3 box regression, 4..5 class logits
    anc = anc_ref[...]            # [12, TILE_A] packed anchor constants

    ax1 = anc[0:1, :]; ay1 = anc[1:2, :]
    ax2 = anc[2:3, :]; ay2 = anc[3:4, :]
    area_a = anc[4:5, :]
    pcx = anc[5:6, :]; pcy = anc[6:7, :]
    inv_vw = anc[7:8, :]; inv_vh = anc[8:9, :]
    log_pw_v = anc[9:10, :]; log_ph_v = anc[10:11, :]
    anc_valid = anc[11:12, :] > 0.0                    # [1, TILE_A]

    bx1 = boxes[:, 0:1]; by1 = boxes[:, 1:2]
    bx2 = boxes[:, 2:3]; by2 = boxes[:, 3:4]           # [N_obj, 1]

    # ---- IoU(anchor, gt box) -> overlap [N_obj, TILE_A] ----
    iw = jnp.maximum(jnp.minimum(bx2, ax2) - jnp.maximum(bx1, ax1), 0.0)
    ih = jnp.maximum(jnp.minimum(by2, ay2) - jnp.maximum(by1, ay1), 0.0)
    inter = iw * ih
    area_b = (bx2 - bx1) * (by2 - by1)
    union = jnp.maximum(area_b + area_a - inter, 1e-20)
    overlap = inter * pl.reciprocal(union, approx=True)   # comparisons-only consumer

    valid_obj = labels >= 0                             # [N_obj, 1]
    overlap = jnp.where(valid_obj, overlap, -1.0)       # overlap[mask] = fill_value

    # ---- match ----
    best = jnp.max(overlap, axis=0, keepdims=True)      # [1, TILE_A]
    positive = (jnp.abs(best - overlap) < 1e-6) & (overlap > POS_TH) & anc_valid
    negative = (best < NEG_TH) & anc_valid               # [1, TILE_A]

    # ---- 'boxes' subloss: encode(gt, prior) vs prediction, SmoothL1 ----
    # Factored encode: all transcendentals are O(N_obj) (gt side) or precomputed (anchor
    # side); the [N_obj, TILE_A] part is only sub/mul (VALU).
    bcx = (bx1 + bx2) * 0.5
    bcy = (by1 + by2) * 0.5
    # Clamp keeps padded gt rows finite; real positives always have w,h > 0.
    log_bw_v = jnp.log(jnp.maximum(bx2 - bx1, 1e-12)) * (1.0 / VARIANCES[1])
    log_bh_v = jnp.log(jnp.maximum(by2 - by1, 1e-12)) * (1.0 / VARIANCES[1])

    t_cx = (bcx - pcx) * inv_vw
    t_cy = (bcy - pcy) * inv_vh
    t_w = log_bw_v - log_pw_v
    t_h = log_bh_v - log_ph_v

    sl1 = (_smooth_l1(pred[0:1, :], t_cx) + _smooth_l1(pred[1:2, :], t_cy) +
           _smooth_l1(pred[2:3, :], t_w) + _smooth_l1(pred[3:4, :], t_h))
    box_lane = jnp.sum(jnp.where(positive, sl1, 0.0), axis=0, keepdims=True)
    pos_lane = jnp.sum(positive.astype(jnp.float32), axis=0, keepdims=True)

    # ---- 'classes' subloss: weighted CE over positives + all negatives ----
    z0 = pred[4:5, :]; z1 = pred[5:6, :]
    # 2-class logsumexp: 1 exp + 1 log1p on the EUP instead of 2 exp + 1 log.
    lse = jnp.maximum(z0, z1) + jnp.log1p(jnp.exp(-jnp.abs(z0 - z1)))
    logp0 = z0 - lse
    logp1 = z1 - lse                                    # [1, TILE_A]

    lbl_is_one = labels == 1                            # [N_obj, 1]
    ce_pos = jnp.where(lbl_is_one, -logp1, -logp0)      # [N_obj, TILE_A]
    w_pos = jnp.where(lbl_is_one, CLASS_WEIGHTS[1], CLASS_WEIGHTS[0])

    cew_lane = jnp.sum(jnp.where(positive, w_pos * ce_pos, 0.0), axis=0, keepdims=True)
    w_lane = jnp.sum(jnp.where(positive, w_pos, 0.0), axis=0, keepdims=True)

    neg_lane = negative.astype(jnp.float32)             # [1, TILE_A]
    cew_lane = cew_lane + CLASS_WEIGHTS[0] * jnp.where(negative, -logp0, 0.0)
    w_lane = w_lane + CLASS_WEIGHTS[0] * neg_lane

    # ---- per-lane accumulation (no cross-lane reduce / scalar store in the hot loop) ----
    acc_ref[0:1, :] += box_lane     # sum SmoothL1 over positive matches (all 4 coords)
    acc_ref[1:2, :] += pos_lane     # number of positive (obj, anchor) pairs
    acc_ref[2:3, :] += cew_lane     # sum of weight[t] * CE
    acc_ref[3:4, :] += w_lane       # sum of weight[t] (CE weighted-'mean' denominator)
    acc_ref[4:5, :] += neg_lane     # number of negative anchors

    @pl.when(a == last_a)
    def _finalize():
        out_ref[...] = jnp.sum(acc_ref[...], axis=1, keepdims=True)[None]


def point_form(anchors):
    cx, cy, w, h = anchors[:, 0], anchors[:, 1], anchors[:, 2], anchors[:, 3]
    return jnp.stack([cx - w / 2, cy - h / 2, cx + w / 2, cy + h / 2], axis=-1)


def _anchor_constants(anchors, a_pad):
    anc = anchors.astype(jnp.float32)
    A = anc.shape[0]
    cx, cy, pw, ph = anc[:, 0], anc[:, 1], anc[:, 2], anc[:, 3]
    x1 = cx - pw * 0.5; y1 = cy - ph * 0.5
    x2 = cx + pw * 0.5; y2 = cy + ph * 0.5
    area = pw * ph
    pw_s = jnp.maximum(pw, 1e-12)
    ph_s = jnp.maximum(ph, 1e-12)
    consts = jnp.stack([
        x1, y1, x2, y2, area, cx, cy,
        1.0 / (VARIANCES[0] * pw_s), 1.0 / (VARIANCES[0] * ph_s),
        jnp.log(pw_s) / VARIANCES[1], jnp.log(ph_s) / VARIANCES[1],
        jnp.ones((A,), jnp.float32),
    ], axis=0)                                           # [12, A]
    if a_pad != A:
        # Padded anchors: degenerate (all-zero) point form -> IoU 0, valid row 0.
        consts = jnp.pad(consts, ((0, 0), (0, a_pad - A)))
    return consts


def detection_loss(pred_boxes, pred_classes, target_boxes, target_labels, anchors,
                   *, tile_a=512):
    B, A, _ = pred_boxes.shape
    n_obj = target_boxes.shape[1]

    # Anchor-axis tiling (multiple of 128 lanes); smaller tiles keep v7x's 64 MiB VMEM safe,
    # bigger tiles amortize per-step overhead on v5e/v6e.
    tile_a = max(128, (int(tile_a) // 128) * 128)
    tile_a = min(tile_a, ((A + 127) // 128) * 128)
    a_pad = ((A + tile_a - 1) // tile_a) * tile_a
    n_tiles = a_pad // tile_a

    # Pack the 4 box regressions + 2 class logits into one lane-major operand [B, 6, A_pad]
    # (one DMA stream per A tile instead of two).
    # TODO(synk): this transpose is one extra HBM pass; could be removed with
    # allow_input_fusion or an in-kernel einshape of (TILE_A, C) tiles.
    pred = jnp.concatenate([pred_boxes.astype(jnp.float32),
                            pred_classes.astype(jnp.float32)], axis=-1)   # [B, A, 6]
    if a_pad != A:
        pred = jnp.pad(pred, ((0, 0), (0, a_pad - A), (0, 0)))
    pred_t = jnp.transpose(pred, (0, 2, 1))               # [B, 6, A_pad]

    anc_consts = _anchor_constants(anchors, a_pad)        # [12, A_pad]
    labels3 = target_labels.astype(jnp.int32)[..., None]  # [B, N_obj, 1]
    boxes = target_boxes.astype(jnp.float32)               # [B, N_obj, 4]

    acc = pl.pallas_call(
        _detection_loss_kernel,
        out_shape=jax.ShapeDtypeStruct((B, 8, 1), jnp.float32),
        grid=(B, n_tiles),
        in_specs=[
            pl.BlockSpec((1, n_obj, 4), lambda b, a: (b, 0, 0)),   # target boxes
            pl.BlockSpec((1, n_obj, 1), lambda b, a: (b, 0, 0)),   # target labels
            pl.BlockSpec((1, 6, tile_a), lambda b, a: (b, 0, a)),  # packed predictions
            pl.BlockSpec((12, tile_a), lambda b, a: (0, a)),       # packed anchor constants
        ],
        out_specs=pl.BlockSpec((1, 8, 1), lambda b, a: (b, 0, 0)),
        scratch_shapes=[pltpu.VMEM((8, tile_a), jnp.float32)],
        compiler_params=pltpu.CompilerParams(
            dimension_semantics=("parallel", "arbitrary"),
            vmem_limit_bytes=32 * 1024 * 1024),
    )(boxes, labels3, pred_t, anc_consts)

    stats = jnp.sum(acc[:, :, 0], axis=0)                # sum per-batch partials
    box_sum, n_pos, ce_w_sum, w_sum = stats[0], stats[1], stats[2], stats[3]
    box_cnt = 4.0 * n_pos                                # element count for SmoothL1 'mean'

    # 'boxes': weight 1.0 * SmoothL1(mean) over positive matches (0 if no positives)
    box_loss = BOX_LOSS_WEIGHT * jnp.where(
        box_cnt > 0.0, box_sum / jnp.maximum(box_cnt, 1.0), 0.0)
    # 'classes': 10.0 * weighted-mean CE over (positives + negatives), / max(n_pos, 1)
    ce_mean = jnp.where(w_sum > 0.0, ce_w_sum / jnp.maximum(w_sum, 1e-20), 0.0)
    class_loss = CLASS_LOSS_WEIGHT * ce_mean / jnp.maximum(n_pos, 1.0)
    # TODO(synk): masked_loss's runtime non-finite guards / debug prints are omitted
    # (inputs are finite; the clamped encode keeps the kernel finite too).
    return {"boxes": box_loss, "classes": class_loss, "loss": box_loss + class_loss}


if __name__ == "__main__":
    B, A, N_OBJ = 2, 128, 8
    key = jax.random.PRNGKey(0)
    k_jit, k_box, k_cls = jax.random.split(key, 3)

    # Deterministic anchors: 16x8 grid of centers, fixed 0.15 x 0.15 size (prior form).
    gx = (jnp.arange(16, dtype=jnp.float32) + 0.5) / 16.0
    gy = (jnp.arange(8, dtype=jnp.float32) + 0.5) / 8.0
    cx, cy = jnp.meshgrid(gx, gy, indexing="ij")
    anchors = jnp.stack([cx.reshape(-1), cy.reshape(-1),
                         jnp.full((A,), 0.15, jnp.float32),
                         jnp.full((A,), 0.15, jnp.float32)], axis=-1)   # [A, 4]
    anchors_pt = point_form(anchors)

    # Targets, padded with -1 exactly like `stack(..., pad_value=-1)`.
    n_valid = [5, 3]
    boxes_list, labels_list = [], []
    for bi in range(B):
        base = anchors_pt[bi * 7: bi * 7 + n_valid[bi]]
        jitter = 0.01 * jax.random.normal(jax.random.fold_in(k_jit, bi),
                                          base.shape, jnp.float32)
        valid_boxes = jnp.clip(base + jitter, 0.0, 1.0)
        pad_b = -jnp.ones((N_OBJ - n_valid[bi], 4), jnp.float32)
        boxes_list.append(jnp.concatenate([valid_boxes, pad_b], axis=0))
        valid_labels = jnp.ones((n_valid[bi],), jnp.int32)
        pad_l = -jnp.ones((N_OBJ - n_valid[bi],), jnp.int32)
        labels_list.append(jnp.concatenate([valid_labels, pad_l], axis=0))
    target_boxes = jnp.stack(boxes_list)     # [B, N_obj, 4]
    target_labels = jnp.stack(labels_list)   # [B, N_obj]

    # Head predictions (regression offsets + 2-class logits).
    pred_boxes = 0.1 * jax.random.normal(k_box, (B, A, 4), jnp.float32)
    pred_classes = jax.random.normal(k_cls, (B, A, 2), jnp.float32)

    losses = detection_loss(pred_boxes, pred_classes, target_boxes,
                            target_labels, anchors)
    jax.block_until_ready(losses["loss"])
    print("KERNEL_OK")
</pallas_src>

<mosaic_0001>
module attributes {stable_mosaic.version = 11 : i64} {
  func.func @_detection_loss_kernel(%arg0: i32, %arg1: i32, %arg2: memref<1x8x4xf32, #tpu.memory_space<vmem>>, %arg3: memref<1x8x1xi32, #tpu.memory_space<vmem>>, %arg4: memref<1x6x128xf32, #tpu.memory_space<vmem>>, %arg5: memref<12x128xf32, #tpu.memory_space<vmem>>, %arg6: memref<1x8x1xf32, #tpu.memory_space<vmem>>, %arg7: memref<8x128xf32, #tpu.memory_space<vmem>>) attributes {dimension_semantics = [#tpu.dimension_semantics<parallel>, #tpu.dimension_semantics<arbitrary>], iteration_bounds = array<i64: 2, 1>, scalar_prefetch = 0 : i64, scratch_operands = 1 : i64, tpu.core_type = #tpu.core_type<tc>, window_params = [{transform_indices = @transform_0, window_bounds = array<i64: 1, 8, 4>}, {transform_indices = @transform_1, window_bounds = array<i64: 1, 8, 1>}, {transform_indices = @transform_2, window_bounds = array<i64: 1, 6, 128>}, {transform_indices = @transform_3, window_bounds = array<i64: 12, 128>}, {transform_indices = @transform_4, window_bounds = array<i64: 1, 8, 1>}]} {
    %c0_i32 = arith.constant 0 : i32
    %0 = arith.cmpi eq, %arg1, %c0_i32 : i32
    %1 = arith.extui %0 : i1 to i32
    %c0_i32_0 = arith.constant 0 : i32
    %2 = arith.cmpi ne, %1, %c0_i32_0 : i32
    scf.if %2 {
      %cst_72 = arith.constant 0.000000e+00 : f32
      %242 = vector.broadcast %cst_72 : f32 to vector<8x128xf32>
      %c0_73 = arith.constant 0 : index
      %c0_74 = arith.constant 0 : index
      %243 = vector.load %arg7[%c0_73, %c0_74] : memref<8x128xf32, #tpu.memory_space<vmem>>, vector<8x128xf32>
      tpu.vector_store %arg7[%c0_73, %c0_74], %242 {strides = array<i32>} : memref<8x128xf32, #tpu.memory_space<vmem>>, vector<8x128xf32>,
    } else {
    }
    %c0 = arith.constant 0 : index
    %c0_1 = arith.constant 0 : index
    %c0_2 = arith.constant 0 : index
    %3 = vector.load %arg2[%c0, %c0_1, %c0_2] : memref<1x8x4xf32, #tpu.memory_space<vmem>>, vector<1x8x4xf32>
    %4 = vector.shape_cast %3 : vector<1x8x4xf32> to vector<8x4xf32>
    %c0_3 = arith.constant 0 : index
    %c0_4 = arith.constant 0 : index
    %c0_5 = arith.constant 0 : index
    %5 = vector.load %arg3[%c0_3, %c0_4, %c0_5] : memref<1x8x1xi32, #tpu.memory_space<vmem>>, vector<1x8x1xi32>
    %6 = vector.shape_cast %5 : vector<1x8x1xi32> to vector<8x1xi32>
    %c0_6 = arith.constant 0 : index
    %c0_7 = arith.constant 0 : index
    %c0_8 = arith.constant 0 : index
    %7 = vector.load %arg4[%c0_6, %c0_7, %c0_8] : memref<1x6x128xf32, #tpu.memory_space<vmem>>, vector<1x6x128xf32>
    %8 = vector.shape_cast %7 : vector<1x6x128xf32> to vector<6x128xf32>
    %c0_9 = arith.constant 0 : index
    %c0_10 = arith.constant 0 : index
    %9 = vector.load %arg5[%c0_9, %c0_10] : memref<12x128xf32, #tpu.memory_space<vmem>>, vector<12x128xf32>
    %10 = vector.extract_strided_slice %9 {offsets = [0, 0], sizes = [1, 128], strides = [1, 1]} : vector<12x128xf32> to vector<1x128xf32>
    %11 = vector.extract_strided_slice %9 {offsets = [1, 0], sizes = [1, 128], strides = [1, 1]} : vector<12x128xf32> to vector<1x128xf32>
    %12 = vector.extract_strided_slice %9 {offsets = [2, 0], sizes = [1, 128], strides = [1, 1]} : vector<12x128xf32> to vector<1x128xf32>
    %13 = vector.extract_strided_slice %9 {offsets = [3, 0], sizes = [1, 128], strides = [1, 1]} : vector<12x128xf32> to vector<1x128xf32>
    %14 = vector.extract_strided_slice %9 {offsets = [4, 0], sizes = [1, 128], strides = [1, 1]} : vector<12x128xf32> to vector<1x128xf32>
    %15 = vector.extract_strided_slice %9 {offsets = [5, 0], sizes = [1, 128], strides = [1, 1]} : vector<12x128xf32> to vector<1x128xf32>
    %16 = vector.extract_strided_slice %9 {offsets = [6, 0], sizes = [1, 128], strides = [1, 1]} : vector<12x128xf32> to vector<1x128xf32>
    %17 = vector.extract_strided_slice %9 {offsets = [7, 0], sizes = [1, 128], strides = [1, 1]} : vector<12x128xf32> to vector<1x128xf32>
    %18 = vector.extract_strided_slice %9 {offsets = [8, 0], sizes = [1, 128], strides = [1, 1]} : vector<12x128xf32> to vector<1x128xf32>
    %19 = vector.extract_strided_slice %9 {offsets = [9, 0], sizes = [1, 128], strides = [1, 1]} : vector<12x128xf32> to vector<1x128xf32>
    %20 = vector.extract_strided_slice %9 {offsets = [10, 0], sizes = [1, 128], strides = [1, 1]} : vector<12x128xf32> to vector<1x128xf32>
    %21 = vector.extract_strided_slice %9 {offsets = [11, 0], sizes = [1, 128], strides = [1, 1]} : vector<12x128xf32> to vector<1x128xf32>
    %cst = arith.constant 0.000000e+00 : f32
    %22 = vector.broadcast %cst : f32 to vector<1x128xf32>
    %23 = arith.cmpf ogt, %21, %22 : vector<1x128xf32>
    %24 = vector.extract_strided_slice %4 {offsets = [0, 0], sizes = [8, 1], strides = [1, 1]} : vector<8x4xf32> to vector<8x1xf32>
    %25 = vector.extract_strided_slice %4 {offsets = [0, 1], sizes = [8, 1], strides = [1, 1]} : vector<8x4xf32> to vector<8x1xf32>
    %26 = vector.extract_strided_slice %4 {offsets = [0, 2], sizes = [8, 1], strides = [1, 1]} : vector<8x4xf32> to vector<8x1xf32>
    %27 = vector.extract_strided_slice %4 {offsets = [0, 3], sizes = [8, 1], strides = [1, 1]} : vector<8x4xf32> to vector<8x1xf32>
    %28 = vector.broadcast %26 : vector<8x1xf32> to vector<8x128xf32>
    %29 = vector.broadcast %12 : vector<1x128xf32> to vector<8x128xf32>
    %30 = arith.minimumf %28, %29 : vector<8x128xf32>
    %31 = vector.broadcast %24 : vector<8x1xf32> to vector<8x128xf32>
    %32 = vector.broadcast %10 : vector<1x128xf32> to vector<8x128xf32>
    %33 = arith.maximumf %31, %32 : vector<8x128xf32>
    %34 = arith.subf %30, %33 : vector<8x128xf32>
    %cst_11 = arith.constant 0.000000e+00 : f32
    %35 = vector.broadcast %cst_11 : f32 to vector<8x128xf32>
    %36 = arith.maximumf %34, %35 : vector<8x128xf32>
    %37 = vector.broadcast %27 : vector<8x1xf32> to vector<8x128xf32>
    %38 = vector.broadcast %13 : vector<1x128xf32> to vector<8x128xf32>
    %39 = arith.minimumf %37, %38 : vector<8x128xf32>
    %40 = vector.broadcast %25 : vector<8x1xf32> to vector<8x128xf32>
    %41 = vector.broadcast %11 : vector<1x128xf32> to vector<8x128xf32>
    %42 = arith.maximumf %40, %41 : vector<8x128xf32>
    %43 = arith.subf %39, %42 : vector<8x128xf32>
    %cst_12 = arith.constant 0.000000e+00 : f32
    %44 = vector.broadcast %cst_12 : f32 to vector<8x128xf32>
    %45 = arith.maximumf %43, %44 : vector<8x128xf32>
    %46 = arith.mulf %36, %45 : vector<8x128xf32>
    %47 = arith.subf %26, %24 : vector<8x1xf32>
    %48 = arith.subf %27, %25 : vector<8x1xf32>
    %49 = arith.mulf %47, %48 : vector<8x1xf32>
    %50 = vector.broadcast %49 : vector<8x1xf32> to vector<8x128xf32>
    %51 = vector.broadcast %14 : vector<1x128xf32> to vector<8x128xf32>
    %52 = arith.addf %50, %51 : vector<8x128xf32>
    %53 = arith.subf %52, %46 : vector<8x128xf32>
    %cst_13 = arith.constant 9.99999968E-21 : f32
    %54 = vector.broadcast %cst_13 : f32 to vector<8x128xf32>
    %55 = arith.maximumf %53, %54 : vector<8x128xf32>
    %56 = tpu.reciprocal %55 {approx = true} : vector<8x128xf32> -> vector<8x128xf32>
    %57 = arith.mulf %46, %56 : vector<8x128xf32>
    %c0_i32_14 = arith.constant 0 : i32
    %58 = vector.broadcast %c0_i32_14 : i32 to vector<8x1xi32>
    %59 = arith.cmpi sge, %6, %58 : vector<8x1xi32>
    %cst_15 = arith.constant -1.000000e+00 : f32
    %60 = vector.shape_cast %59 : vector<8x1xi1> to vector<8x1xi1>
    %61 = vector.broadcast %60 : vector<8x1xi1> to vector<8x128xi1>
    %62 = vector.broadcast %cst_15 : f32 to vector<8x128xf32>
    %63 = arith.select %61, %57, %62 : vector<8x128xi1>, vector<8x128xf32>
    %cst_16 = arith.constant dense<0xFF800000> : vector<128xf32>
    %64 = vector.multi_reduction <maximumf>, %63, %cst_16 [0] : vector<8x128xf32> to vector<128xf32>
    %65 = vector.shape_cast %64 : vector<128xf32> to vector<1x128xf32>
    %66 = vector.broadcast %65 : vector<1x128xf32> to vector<8x128xf32>
    %67 = arith.subf %66, %63 : vector<8x128xf32>
    %68 = math.absf %67 : vector<8x128xf32>
    %cst_17 = arith.constant 9.99999997E-7 : f32
    %69 = vector.broadcast %cst_17 : f32 to vector<8x128xf32>
    %70 = arith.cmpf olt, %68, %69 : vector<8x128xf32>
    %cst_18 = arith.constant 5.000000e-01 : f32
    %71 = vector.broadcast %cst_18 : f32 to vector<8x128xf32>
    %72 = arith.cmpf ogt, %63, %71 : vector<8x128xf32>
    %73 = arith.andi %70, %72 : vector<8x128xi1>
    %74 = vector.broadcast %23 : vector<1x128xi1> to vector<8x128xi1>
    %75 = arith.andi %73, %74 : vector<8x128xi1>
    %cst_19 = arith.constant 5.000000e-01 : f32
    %76 = vector.broadcast %cst_19 : f32 to vector<1x128xf32>
    %77 = arith.cmpf olt, %65, %76 : vector<1x128xf32>
    %78 = arith.andi %77, %23 : vector<1x128xi1>
    %79 = arith.addf %24, %26 : vector<8x1xf32>
    %cst_20 = arith.constant 5.000000e-01 : f32
    %80 = vector.broadcast %cst_20 : f32 to vector<8x1xf32>
    %81 = arith.mulf %79, %80 : vector<8x1xf32>
    %82 = arith.addf %25, %27 : vector<8x1xf32>
    %cst_21 = arith.constant 5.000000e-01 : f32
    %83 = vector.broadcast %cst_21 : f32 to vector<8x1xf32>
    %84 = arith.mulf %82, %83 : vector<8x1xf32>
    %85 = arith.subf %26, %24 : vector<8x1xf32>
    %cst_22 = arith.constant 9.99999996E-13 : f32
    %86 = vector.broadcast %cst_22 : f32 to vector<8x1xf32>
    %87 = arith.maximumf %85, %86 : vector<8x1xf32>
    %88 = math.log %87 : vector<8x1xf32>
    %cst_23 = arith.constant 5.000000e+00 : f32
    %89 = vector.broadcast %cst_23 : f32 to vector<8x1xf32>
    %90 = arith.mulf %88, %89 : vector<8x1xf32>
    %91 = arith.subf %27, %25 : vector<8x1xf32>
    %cst_24 = arith.constant 9.99999996E-13 : f32
    %92 = vector.broadcast %cst_24 : f32 to vector<8x1xf32>
    %93 = arith.maximumf %91, %92 : vector<8x1xf32>
    %94 = math.log %93 : vector<8x1xf32>
    %cst_25 = arith.constant 5.000000e+00 : f32
    %95 = vector.broadcast %cst_25 : f32 to vector<8x1xf32>
    %96 = arith.mulf %94, %95 : vector<8x1xf32>
    %97 = vector.broadcast %81 : vector<8x1xf32> to vector<8x128xf32>
    %98 = vector.broadcast %15 : vector<1x128xf32> to vector<8x128xf32>
    %99 = arith.subf %97, %98 : vector<8x128xf32>
    %100 = vector.broadcast %17 : vector<1x128xf32> to vector<8x128xf32>
    %101 = arith.mulf %99, %100 : vector<8x128xf32>
    %102 = vector.broadcast %84 : vector<8x1xf32> to vector<8x128xf32>
    %103 = vector.broadcast %16 : vector<1x128xf32> to vector<8x128xf32>
    %104 = arith.subf %102, %103 : vector<8x128xf32>
    %105 = vector.broadcast %18 : vector<1x128xf32> to vector<8x128xf32>
    %106 = arith.mulf %104, %105 : vector<8x128xf32>
    %107 = vector.broadcast %90 : vector<8x1xf32> to vector<8x128xf32>
    %108 = vector.broadcast %19 : vector<1x128xf32> to vector<8x128xf32>
    %109 = arith.subf %107, %108 : vector<8x128xf32>
    %110 = vector.broadcast %96 : vector<8x1xf32> to vector<8x128xf32>
    %111 = vector.broadcast %20 : vector<1x128xf32> to vector<8x128xf32>
    %112 = arith.subf %110, %111 : vector<8x128xf32>
    %113 = vector.extract_strided_slice %8 {offsets = [0, 0], sizes = [1, 128], strides = [1, 1]} : vector<6x128xf32> to vector<1x128xf32>
    %114 = vector.broadcast %113 : vector<1x128xf32> to vector<8x128xf32>
    %115 = arith.subf %114, %101 : vector<8x128xf32>
    %116 = math.absf %115 : vector<8x128xf32>
    %cst_26 = arith.constant 1.000000e+00 : f32
    %117 = vector.broadcast %cst_26 : f32 to vector<8x128xf32>
    %118 = arith.cmpf olt, %116, %117 : vector<8x128xf32>
    %cst_27 = arith.constant 5.000000e-01 : f32
    %119 = vector.broadcast %cst_27 : f32 to vector<8x128xf32>
    %120 = arith.mulf %119, %115 : vector<8x128xf32>
    %121 = arith.mulf %120, %115 : vector<8x128xf32>
    %cst_28 = arith.constant 5.000000e-01 : f32
    %122 = vector.broadcast %cst_28 : f32 to vector<8x128xf32>
    %123 = arith.subf %116, %122 : vector<8x128xf32>
    %124 = arith.select %118, %121, %123 : vector<8x128xi1>, vector<8x128xf32>
    %125 = vector.extract_strided_slice %8 {offsets = [1, 0], sizes = [1, 128], strides = [1, 1]} : vector<6x128xf32> to vector<1x128xf32>
    %126 = vector.broadcast %125 : vector<1x128xf32> to vector<8x128xf32>
    %127 = arith.subf %126, %106 : vector<8x128xf32>
    %128 = math.absf %127 : vector<8x128xf32>
    %cst_29 = arith.constant 1.000000e+00 : f32
    %129 = vector.broadcast %cst_29 : f32 to vector<8x128xf32>
    %130 = arith.cmpf olt, %128, %129 : vector<8x128xf32>
    %cst_30 = arith.constant 5.000000e-01 : f32
    %131 = vector.broadcast %cst_30 : f32 to vector<8x128xf32>
    %132 = arith.mulf %131, %127 : vector<8x128xf32>
    %133 = arith.mulf %132, %127 : vector<8x128xf32>
    %cst_31 = arith.constant 5.000000e-01 : f32
    %134 = vector.broadcast %cst_31 : f32 to vector<8x128xf32>
    %135 = arith.subf %128, %134 : vector<8x128xf32>
    %136 = arith.select %130, %133, %135 : vector<8x128xi1>, vector<8x128xf32>
    %137 = arith.addf %124, %136 : vector<8x128xf32>
    %138 = vector.extract_strided_slice %8 {offsets = [2, 0], sizes = [1, 128], strides = [1, 1]} : vector<6x128xf32> to vector<1x128xf32>
    %139 = vector.broadcast %138 : vector<1x128xf32> to vector<8x128xf32>
    %140 = arith.subf %139, %109 : vector<8x128xf32>
    %141 = math.absf %140 : vector<8x128xf32>
    %cst_32 = arith.constant 1.000000e+00 : f32
    %142 = vector.broadcast %cst_32 : f32 to vector<8x128xf32>
    %143 = arith.cmpf olt, %141, %142 : vector<8x128xf32>
    %cst_33 = arith.constant 5.000000e-01 : f32
    %144 = vector.broadcast %cst_33 : f32 to vector<8x128xf32>
    %145 = arith.mulf %144, %140 : vector<8x128xf32>
    %146 = arith.mulf %145, %140 : vector<8x128xf32>
    %cst_34 = arith.constant 5.000000e-01 : f32
    %147 = vector.broadcast %cst_34 : f32 to vector<8x128xf32>
    %148 = arith.subf %141, %147 : vector<8x128xf32>
    %149 = arith.select %143, %146, %148 : vector<8x128xi1>, vector<8x128xf32>
    %150 = arith.addf %137, %149 : vector<8x128xf32>
    %151 = vector.extract_strided_slice %8 {offsets = [3, 0], sizes = [1, 128], strides = [1, 1]} : vector<6x128xf32> to vector<1x128xf32>
    %152 = vector.broadcast %151 : vector<1x128xf32> to vector<8x128xf32>
    %153 = arith.subf %152, %112 : vector<8x128xf32>
    %154 = math.absf %153 : vector<8x128xf32>
    %cst_35 = arith.constant 1.000000e+00 : f32
    %155 = vector.broadcast %cst_35 : f32 to vector<8x128xf32>
    %156 = arith.cmpf olt, %154, %155 : vector<8x128xf32>
    %cst_36 = arith.constant 5.000000e-01 : f32
    %157 = vector.broadcast %cst_36 : f32 to vector<8x128xf32>
    %158 = arith.mulf %157, %153 : vector<8x128xf32>
    %159 = arith.mulf %158, %153 : vector<8x128xf32>
    %cst_37 = arith.constant 5.000000e-01 : f32
    %160 = vector.broadcast %cst_37 : f32 to vector<8x128xf32>
    %161 = arith.subf %154, %160 : vector<8x128xf32>
    %162 = arith.select %156, %159, %161 : vector<8x128xi1>, vector<8x128xf32>
    %163 = arith.addf %150, %162 : vector<8x128xf32>
    %cst_38 = arith.constant 0.000000e+00 : f32
    %164 = vector.broadcast %cst_38 : f32 to vector<8x128xf32>
    %165 = arith.select %75, %163, %164 : vector<8x128xi1>, vector<8x128xf32>
    %cst_39 = arith.constant dense<0.000000e+00> : vector<128xf32>
    %166 = vector.multi_reduction <add>, %165, %cst_39 [0] : vector<8x128xf32> to vector<128xf32>
    %167 = vector.shape_cast %166 : vector<128xf32> to vector<1x128xf32>
    %168 = arith.extui %75 : vector<8x128xi1> to vector<8x128xi32>
    %169 = arith.sitofp %168 : vector<8x128xi32> to vector<8x128xf32>
    %cst_40 = arith.constant dense<0.000000e+00> : vector<128xf32>
    %170 = vector.multi_reduction <add>, %169, %cst_40 [0] : vector<8x128xf32> to vector<128xf32>
    %171 = vector.shape_cast %170 : vector<128xf32> to vector<1x128xf32>
    %172 = vector.extract_strided_slice %8 {offsets = [4, 0], sizes = [1, 128], strides = [1, 1]} : vector<6x128xf32> to vector<1x128xf32>
    %173 = vector.extract_strided_slice %8 {offsets = [5, 0], sizes = [1, 128], strides = [1, 1]} : vector<6x128xf32> to vector<1x128xf32>
    %174 = arith.maximumf %172, %173 : vector<1x128xf32>
    %175 = arith.subf %172, %173 : vector<1x128xf32>
    %176 = math.absf %175 : vector<1x128xf32>
    %cst_41 = arith.constant 0.000000e+00 : f32
    %177 = vector.broadcast %cst_41 : f32 to vector<1x128xf32>
    %178 = arith.subf %177, %176 : vector<1x128xf32>
    %179 = math.exp %178 : vector<1x128xf32>
    %180 = math.log1p %179 : vector<1x128xf32>
    %181 = arith.addf %174, %180 : vector<1x128xf32>
    %182 = arith.subf %172, %181 : vector<1x128xf32>
    %183 = arith.subf %173, %181 : vector<1x128xf32>
    %c1_i32 = arith.constant 1 : i32
    %184 = vector.broadcast %c1_i32 : i32 to vector<8x1xi32>
    %185 = arith.cmpi eq, %6, %184 : vector<8x1xi32>
    %cst_42 = arith.constant 0.000000e+00 : f32
    %186 = vector.broadcast %cst_42 : f32 to vector<1x128xf32>
    %187 = arith.subf %186, %183 : vector<1x128xf32>
    %cst_43 = arith.constant 0.000000e+00 : f32
    %188 = vector.broadcast %cst_43 : f32 to vector<1x128xf32>
    %189 = arith.subf %188, %182 : vector<1x128xf32>
    %190 = vector.shape_cast %185 : vector<8x1xi1> to vector<8x1xi1>
    %191 = vector.broadcast %190 : vector<8x1xi1> to vector<8x128xi1>
    %192 = vector.shape_cast %187 : vector<1x128xf32> to vector<1x128xf32>
    %193 = vector.broadcast %192 : vector<1x128xf32> to vector<8x128xf32>
    %194 = vector.shape_cast %189 : vector<1x128xf32> to vector<1x128xf32>
    %195 = vector.broadcast %194 : vector<1x128xf32> to vector<8x128xf32>
    %196 = arith.select %191, %193, %195 : vector<8x128xi1>, vector<8x128xf32>
    %cst_44 = arith.constant 4.000000e+00 : f32
    %cst_45 = arith.constant 1.000000e+00 : f32
    %197 = vector.broadcast %cst_44 : f32 to vector<8x1xf32>
    %198 = vector.broadcast %cst_45 : f32 to vector<8x1xf32>
    %199 = arith.select %185, %197, %198 : vector<8x1xi1>, vector<8x1xf32>
    %200 = vector.broadcast %199 : vector<8x1xf32> to vector<8x128xf32>
    %201 = arith.mulf %200, %196 : vector<8x128xf32>
    %cst_46 = arith.constant 0.000000e+00 : f32
    %202 = vector.broadcast %cst_46 : f32 to vector<8x128xf32>
    %203 = arith.select %75, %201, %202 : vector<8x128xi1>, vector<8x128xf32>
    %cst_47 = arith.constant dense<0.000000e+00> : vector<128xf32>
    %204 = vector.multi_reduction <add>, %203, %cst_47 [0] : vector<8x128xf32> to vector<128xf32>
    %205 = vector.shape_cast %204 : vector<128xf32> to vector<1x128xf32>
    %cst_48 = arith.constant 0.000000e+00 : f32
    %206 = vector.shape_cast %199 : vector<8x1xf32> to vector<8x1xf32>
    %207 = vector.broadcast %206 : vector<8x1xf32> to vector<8x128xf32>
    %208 = vector.broadcast %cst_48 : f32 to vector<8x128xf32>
    %209 = arith.select %75, %207, %208 : vector<8x128xi1>, vector<8x128xf32>
    %cst_49 = arith.constant dense<0.000000e+00> : vector<128xf32>
    %210 = vector.multi_reduction <add>, %209, %cst_49 [0] : vector<8x128xf32> to vector<128xf32>
    %211 = vector.shape_cast %210 : vector<128xf32> to vector<1x128xf32>
    %212 = arith.extui %78 : vector<1x128xi1> to vector<1x128xi32>
    %213 = arith.sitofp %212 : vector<1x128xi32> to vector<1x128xf32>
    %cst_50 = arith.constant 0.000000e+00 : f32
    %214 = vector.broadcast %cst_50 : f32 to vector<1x128xf32>
    %215 = arith.subf %214, %182 : vector<1x128xf32>
    %cst_51 = arith.constant 0.000000e+00 : f32
    %216 = vector.broadcast %cst_51 : f32 to vector<1x128xf32>
    %217 = arith.select %78, %215, %216 : vector<1x128xi1>, vector<1x128xf32>
    %cst_52 = arith.constant 1.000000e+00 : f32
    %218 = vector.broadcast %cst_52 : f32 to vector<1x128xf32>
    %219 = arith.mulf %218, %217 : vector<1x128xf32>
    %220 = arith.addf %205, %219 : vector<1x128xf32>
    %cst_53 = arith.constant 1.000000e+00 : f32
    %221 = vector.broadcast %cst_53 : f32 to vector<1x128xf32>
    %222 = arith.mulf %221, %213 : vector<1x128xf32>
    %223 = arith.addf %211, %222 : vector<1x128xf32>
    %c0_54 = arith.constant 0 : index
    %c0_55 = arith.constant 0 : index
    %224 = vector.load %arg7[%c0_54, %c0_55] : memref<8x128xf32, #tpu.memory_space<vmem>>, vector<1x128xf32>
    %225 = arith.addf %224, %167 : vector<1x128xf32>
    %c0_56 = arith.constant 0 : index
    %c0_57 = arith.constant 0 : index
    %226 = vector.load %arg7[%c0_56, %c0_57] : memref<8x128xf32, #tpu.memory_space<vmem>>, vector<1x128xf32>
    tpu.vector_store %arg7[%c0_56, %c0_57], %225 {strides = array<i32>} : memref<8x128xf32, #tpu.memory_space<vmem>>, vector<1x128xf32>,
    %c1 = arith.constant 1 : index
    %c0_58 = arith.constant 0 : index
    %227 = vector.load %arg7[%c1, %c0_58] : memref<8x128xf32, #tpu.memory_space<vmem>>, vector<1x128xf32>
    %228 = arith.addf %227, %171 : vector<1x128xf32>
    %c1_59 = arith.constant 1 : index
    %c0_60 = arith.constant 0 : index
    %229 = vector.load %arg7[%c1_59, %c0_60] : memref<8x128xf32, #tpu.memory_space<vmem>>, vector<1x128xf32>
    tpu.vector_store %arg7[%c1_59, %c0_60], %228 {strides = array<i32>} : memref<8x128xf32, #tpu.memory_space<vmem>>, vector<1x128xf32>,
    %c2 = arith.constant 2 : index
    %c0_61 = arith.constant 0 : index
    %230 = vector.load %arg7[%c2, %c0_61] : memref<8x128xf32, #tpu.memory_space<vmem>>, vector<1x128xf32>
    %231 = arith.addf %230, %220 : vector<1x128xf32>
    %c2_62 = arith.constant 2 : index
    %c0_63 = arith.constant 0 : index
    %232 = vector.load %arg7[%c2_62, %c0_63] : memref<8x128xf32, #tpu.memory_space<vmem>>, vector<1x128xf32>
    tpu.vector_store %arg7[%c2_62, %c0_63], %231 {strides = array<i32>} : memref<8x128xf32, #tpu.memory_space<vmem>>, vector<1x128xf32>,
    %c3 = arith.constant 3 : index
    %c0_64 = arith.constant 0 : index
    %233 = vector.load %arg7[%c3, %c0_64] : memref<8x128xf32, #tpu.memory_space<vmem>>, vector<1x128xf32>
    %234 = arith.addf %233, %223 : vector<1x128xf32>
    %c3_65 = arith.constant 3 : index
    %c0_66 = arith.constant 0 : index
    %235 = vector.load %arg7[%c3_65, %c0_66] : memref<8x128xf32, #tpu.memory_space<vmem>>, vector<1x128xf32>
    tpu.vector_store %arg7[%c3_65, %c0_66], %234 {strides = array<i32>} : memref<8x128xf32, #tpu.memory_space<vmem>>, vector<1x128xf32>,
    %c4 = arith.constant 4 : index
    %c0_67 = arith.constant 0 : index
    %236 = vector.load %arg7[%c4, %c0_67] : memref<8x128xf32, #tpu.memory_space<vmem>>, vector<1x128xf32>
    %237 = arith.addf %236, %213 : vector<1x128xf32>
    %c4_68 = arith.constant 4 : index
    %c0_69 = arith.constant 0 : index
    %238 = vector.load %arg7[%c4_68, %c0_69] : memref<8x128xf32, #tpu.memory_space<vmem>>, vector<1x128xf32>
    tpu.vector_store %arg7[%c4_68, %c0_69], %237 {strides = array<i32>} : memref<8x128xf32, #tpu.memory_space<vmem>>, vector<1x128xf32>,
    %c0_i32_70 = arith.constant 0 : i32
    %239 = arith.cmpi eq, %arg1, %c0_i32_70 : i32
    %240 = arith.extui %239 : i1 to i32
    %c0_i32_71 = arith.constant 0 : i32
    %241 = arith.cmpi ne, %240, %c0_i32_71 : i32
    scf.if %241 {
      %c0_72 = arith.constant 0 : index
      %c0_73 = arith.constant 0 : index
      %242 = vector.load %arg7[%c0_72, %c0_73] : memref<8x128xf32, #tpu.memory_space<vmem>>, vector<8x128xf32>
      %cst_74 = arith.constant dense<0.000000e+00> : vector<8xf32>
      %243 = vector.multi_reduction <add>, %242, %cst_74 [1] : vector<8x128xf32> to vector<8xf32>
      %244 = vector.shape_cast %243 : vector<8xf32> to vector<8x1xf32>
      %245 = vector.shape_cast %244 : vector<8x1xf32> to vector<1x8x1xf32>
      %c0_75 = arith.constant 0 : index
      %c0_76 = arith.constant 0 : index
      %c0_77 = arith.constant 0 : index
      %246 = vector.load %arg6[%c0_75, %c0_76, %c0_77] : memref<1x8x1xf32, #tpu.memory_space<vmem>>, vector<1x8x1xf32>
      tpu.vector_store %arg6[%c0_75, %c0_76, %c0_77], %245 {strides = array<i32>} : memref<1x8x1xf32, #tpu.memory_space<vmem>>, vector<1x8x1xf32>,
    } else {
    }
    return
  }
  func.func @transform_0(%arg0: i32, %arg1: i32) -> (i32, i32, i32) {
    %c0_i32 = arith.constant 0 : i32
    %c0_i32_0 = arith.constant 0 : i32
    %c0_i32_1 = arith.constant 0 : i32
    return %arg0, %c0_i32, %c0_i32_0 : i32, i32, i32
  }
  func.func @transform_1(%arg0: i32, %arg1: i32) -> (i32, i32, i32) {
    %c0_i32 = arith.constant 0 : i32
    %c0_i32_0 = arith.constant 0 : i32
    %c0_i32_1 = arith.constant 0 : i32
    return %arg0, %c0_i32, %c0_i32_0 : i32, i32, i32
  }
  func.func @transform_2(%arg0: i32, %arg1: i32) -> (i32, i32, i32) {
    %c0_i32 = arith.constant 0 : i32
    %c0_i32_0 = arith.constant 0 : i32
    return %arg0, %c0_i32, %arg1 : i32, i32, i32
  }
  func.func @transform_3(%arg0: i32, %arg1: i32) -> (i32, i32) {
    %c0_i32 = arith.constant 0 : i32
    %c0_i32_0 = arith.constant 0 : i32
    return %c0_i32, %arg1 : i32, i32
  }
  func.func @transform_4(%arg0: i32, %arg1: i32) -> (i32, i32, i32) {
    %c0_i32 = arith.constant 0 : i32
    %c0_i32_0 = arith.constant 0 : i32
    %c0_i32_1 = arith.constant 0 : i32
    return %arg0, %c0_i32, %c0_i32_0 : i32, i32, i32
  }
}

</mosaic_0001>

<llo_original>
// kernel: tpu_custom_call.1
$region0: #{tpu_custom_call.1}
  #allocation0 [shape = 'u32[]', space=smem, size = 0x4, offset = 0x4, fixed_abs, tag = 'smem constant byte address 0x4 - core index']
  #allocation1 [shape = 'u32[144,128]{1,0:T(1,128)}', space=vmem, size = 0x12000, scoped, tag = 'internal scratch']
  #allocation2 [shape = 'f32[8,128]{1,0:T(8,128)}', space=vmem, size = 0x1000, scoped, tag = 'scratch operand']
  %s0 = inlined_call_operand.vmem [shape: f32[2,8,4], index: 0, kind: input, shape index: {}]
  %s1 = inlined_call_operand.vmem [shape: s32[2,8,1], index: 1, kind: input, shape index: {}]
  %s2 = inlined_call_operand.vmem [shape: f32[2,6,128], index: 2, kind: input, shape index: {}]
  %s3 = inlined_call_operand.vmem [shape: f32[12,128], index: 3, kind: input, shape index: {}]
  %s4 = inlined_call_operand.vmem [shape: f32[2,8,1], index: 4, kind: output, shape index: {}]
  %s5 = sld [smem:[#allocation0]]
  $region57: #{tpu_custom_call.1} parent=0
    _
  %s7 = ssub.s32 1, %s5
  %s8 = scalar_select 0, %s7, %s5
  loop: start=0, step=1, limit=4
  $region2: #{tpu_custom_call.1} parent=0 // loop_pre_header
    _
  $region3: #{tpu_custom_call.1} parent=0 // loop_header
    %s10 = sphi 0, %s14
    %p11 = scmp.ge.s32.totalorder %s10, 4
    %s17 = sphi 0, %s29
    %s18 = sphi 0, %s25
    %s19 = sphi 0, %s17
    %s20 = sphi 0, %s18
    %s21 = sphi 0, %s19
    %s22 = sphi 0, %s20
    %s32 = sphi 0, %s34
    %s35 = sphi 0, %s32
    %s36 = sphi 0, %s35
    %s52 = sphi 0, %s36
    %s58 = sphi 0, %s60
    %s61 = sphi 0, %s58
    %s62 = sphi 0, %s61
    %s78 = sphi 0, %s62
    %s86 = sphi 0, %s88
    %s89 = sphi 0, %s86
    %s90 = sphi 0, %s89
    %s106 = sphi 0, %s90
    %s112 = sphi 0, %s114
    %s115 = sphi 0, %s112
    %s116 = sphi 0, %s115
    %s132 = sphi 0, %s116
    %s138 = sphi 0, %s140
    %s141 = sphi 0, %s138
    %s142 = sphi 0, %s141
    %s158 = sphi 0, %s142
  $region4: #{tpu_custom_call.1} parent=0 // loop_header_branch
    %13 = sbr.rel (%p11) target = $region8
  $region5: #{tpu_custom_call.1} parent=0 // loop_body
    %s15 = ssub.s32 %s10, 1
    %s16 = ssub.s32 %s10, 2
    %s23 = sadd.s32 1, %s18
    %p24 = scmp.ge.s32.totalorder %s23, 1
    %s25 = scalar_select %p24, 0, %s23
    %s26 = sadd.s32 1, %s17
    %s27 = scalar_select %p24, %s26, %s17
    %p28 = scmp.ge.s32.totalorder %s27, 2
    %s29 = scalar_select %p28, 0, %s27
    %s30 = ssub.s32 %s17, %s29
    %p31 = scmp.eq.s32.totalorder %s30, 0
    %s33 = sadd.s32 %s32, 1
    %s34 = scalar_select %p31, %s32, %s33
    %p37 = pneg %p31
    %p38 = scmp.eq.s32.totalorder %s10, 1
    %p39 = por %p37, %p38
    %p40 = scmp.ne.s32.totalorder %s32, %s35
    %p41 = scmp.eq.s32.totalorder %s10, 0
    %p42 = por %p40, %p41
    %p43 = scmp.ne.s32.totalorder %s32, %s35
    %p44 = scmp.eq.s32.totalorder %s15, 1
    %p45 = por %p43, %p44
    %p46 = scmp.ne.s32.totalorder %s35, %s36
    %p47 = scmp.eq.s32.totalorder %s15, 0
    %p48 = por %p46, %p47
    %p49 = scmp.ne.s32.totalorder %s35, %s36
    %p50 = scmp.eq.s32.totalorder %s16, 1
    %p51 = por %p49, %p50
    %p53 = scmp.ne.s32.totalorder %s36, %s52
    %p54 = scmp.eq.s32.totalorder %s16, 0
    %p55 = por %p53, %p54
    %s56 = ssub.s32 %s17, %s29
    %p57 = scmp.eq.s32.totalorder %s56, 0
    %s59 = sadd.s32 %s58, 1
    %s60 = scalar_select %p57, %s58, %s59
    %p63 = pneg %p57
    %p64 = scmp.eq.s32.totalorder %s10, 1
    %p65 = por %p63, %p64
    %p66 = scmp.ne.s32.totalorder %s58, %s61
    %p67 = scmp.eq.s32.totalorder %s10, 0
    %p68 = por %p66, %p67
    %p69 = scmp.ne.s32.totalorder %s58, %s61
    %p70 = scmp.eq.s32.totalorder %s15, 1
    %p71 = por %p69, %p70
    %p72 = scmp.ne.s32.totalorder %s61, %s62
    %p73 = scmp.eq.s32.totalorder %s15, 0
    %p74 = por %p72, %p73
    %p75 = scmp.ne.s32.totalorder %s61, %s62
    %p76 = scmp.eq.s32.totalorder %s16, 1
    %p77 = por %p75, %p76
    %p79 = scmp.ne.s32.totalorder %s62, %s78
    %p80 = scmp.eq.s32.totalorder %s16, 0
    %p81 = por %p79, %p80
    %s82 = ssub.s32 %s17, %s29
    %s83 = ssub.s32 %s18, %s25
    %s84 = sor.u32 %s82, %s83
    %p85 = scmp.eq.s32.totalorder %s84, 0
    %s87 = sadd.s32 %s86, 1
    %s88 = scalar_select %p85, %s86, %s87
    %p91 = pneg %p85
    %p92 = scmp.eq.s32.totalorder %s10, 1
    %p93 = por %p91, %p92
    %p94 = scmp.ne.s32.totalorder %s86, %s89
    %p95 = scmp.eq.s32.totalorder %s10, 0
    %p96 = por %p94, %p95
    %p97 = scmp.ne.s32.totalorder %s86, %s89
    %p98 = scmp.eq.s32.totalorder %s15, 1
    %p99 = por %p97, %p98
    %p100 = scmp.ne.s32.totalorder %s89, %s90
    %p101 = scmp.eq.s32.totalorder %s15, 0
    %p102 = por %p100, %p101
    %p103 = scmp.ne.s32.totalorder %s89, %s90
    %p104 = scmp.eq.s32.totalorder %s16, 1
    %p105 = por %p103, %p104
    %p107 = scmp.ne.s32.totalorder %s90, %s106
    %p108 = scmp.eq.s32.totalorder %s16, 0
    %p109 = por %p107, %p108
    %s110 = ssub.s32 %s18, %s25
    %p111 = scmp.eq.s32.totalorder %s110, 0
    %s113 = sadd.s32 %s112, 1
    %s114 = scalar_select %p111, %s112, %s113
    %p117 = pneg %p111
    %p118 = scmp.eq.s32.totalorder %s10, 1
    %p119 = por %p117, %p118
    %p120 = scmp.ne.s32.totalorder %s112, %s115
    %p121 = scmp.eq.s32.totalorder %s10, 0
    %p122 = por %p120, %p121
    %p123 = scmp.ne.s32.totalorder %s112, %s115
    %p124 = scmp.eq.s32.totalorder %s15, 1
    %p125 = por %p123, %p124
    %p126 = scmp.ne.s32.totalorder %s115, %s116
    %p127 = scmp.eq.s32.totalorder %s15, 0
    %p128 = por %p126, %p127
    %p129 = scmp.ne.s32.totalorder %s115, %s116
    %p130 = scmp.eq.s32.totalorder %s16, 1
    %p131 = por %p129, %p130
    %p133 = scmp.ne.s32.totalorder %s116, %s132
    %p134 = scmp.eq.s32.totalorder %s16, 0
    %p135 = por %p133, %p134
    %s136 = ssub.s32 %s17, %s29
    %p137 = scmp.eq.s32.totalorder %s136, 0
    %s139 = sadd.s32 %s138, 1
    %s140 = scalar_select %p137, %s138, %s139
    %p143 = pneg %p137
    %p144 = scmp.eq.s32.totalorder %s10, 1
    %p145 = por %p143, %p144
    %p146 = scmp.ne.s32.totalorder %s138, %s141
    %p147 = scmp.eq.s32.totalorder %s10, 0
    %p148 = por %p146, %p147
    %p149 = scmp.ne.s32.totalorder %s138, %s141
    %p150 = scmp.eq.s32.totalorder %s15, 1
    %p151 = por %p149, %p150
    %p152 = scmp.ne.s32.totalorder %s141, %s142
    %p153 = scmp.eq.s32.totalorder %s15, 0
    %p154 = por %p152, %p153
    %p155 = scmp.ne.s32.totalorder %s141, %s142
    %p156 = scmp.eq.s32.totalorder %s16, 1
    %p157 = por %p155, %p156
    %p159 = scmp.ne.s32.totalorder %s142, %s158
    %p160 = scmp.eq.s32.totalorder %s16, 0
    %p161 = por %p159, %p160
    %p162 = scmp.le.s32.totalorder 1, %s10
    %p163 = scmp.lt.s32.totalorder %s10, 3
    %p164 = pnand %p162, %p163
    %p165 = pneg %p164
    // Predicated region
    $region9: #{tpu_custom_call.1} parent=5 // pred_check
      _
    $region10: #{tpu_custom_call.1} parent=5 // pred_check_branch
      %167 = sbr.rel (%p164) target = $region12
    $region11: #{tpu_custom_call.1} parent=5 // pred_region
      %s168 = ssub.s32 %s10, 1
      // Predicated region
      $region13: #{tpu_custom_call.1} parent=11 // pred_check
        %p169 = pneg %p128
      $region14: #{tpu_custom_call.1} parent=11 // pred_check_branch
        %171 = sbr.rel (%p169) target = $region16
      $region15: #{tpu_custom_call.1} parent=11 // pred_region
        %p172 = scmp.lt.s32.totalorder %s20, 0
        %s173 = scalar_select %p172, %s20, 0
        %s174 = smul.addr %s173, 8
        %s175 = scalar_lea.vmem %s3, %s174
      $region16: #{tpu_custom_call.1} parent=11 // pred_fallthru
        _
    $region12: #{tpu_custom_call.1} parent=5 // pred_fallthru
      _
    %p176 = scmp.lt.s32.totalorder %s10, 2
    // Predicated region
    $region17: #{tpu_custom_call.1} parent=5 // pred_check
      %p177 = pneg %p176
    $region18: #{tpu_custom_call.1} parent=5 // pred_check_branch
      %179 = sbr.rel (%p177) target = $region20
    $region19: #{tpu_custom_call.1} parent=5 // pred_region
      // Predicated region
      $region21: #{tpu_custom_call.1} parent=19 // pred_check
        %p180 = pneg %p42
      $region22: #{tpu_custom_call.1} parent=19 // pred_check_branch
        %182 = sbr.rel (%p180) target = $region24
      $region23: #{tpu_custom_call.1} parent=19 // pred_region
        %p183 = scmp.lt.s32.totalorder %s17, 1
        %s184 = scalar_select %p183, %s17, 1
        %s185 = smul.addr %s184, 8
        %s186 = scalar_lea.vmem %s0, %s185
      $region24: #{tpu_custom_call.1} parent=19 // pred_fallthru
        _
      // Predicated region
      $region25: #{tpu_custom_call.1} parent=19 // pred_check
        %p187 = pneg %p68
      $region26: #{tpu_custom_call.1} parent=19 // pred_check_branch
        %189 = sbr.rel (%p187) target = $region28
      $region27: #{tpu_custom_call.1} parent=19 // pred_region
        %p190 = scmp.lt.s32.totalorder %s17, 1
        %s191 = scalar_select %p190, %s17, 1
        %s192 = smul.addr %s191, 8
        %s193 = scalar_lea.vmem %s1, %s192
      $region28: #{tpu_custom_call.1} parent=19 // pred_fallthru
        _
      // Predicated region
      $region29: #{tpu_custom_call.1} parent=19 // pred_check
        %p194 = pneg %p96
      $region30: #{tpu_custom_call.1} parent=19 // pred_check_branch
        %196 = sbr.rel (%p194) target = $region32
      $region31: #{tpu_custom_call.1} parent=19 // pred_region
        %p197 = scmp.lt.s32.totalorder %s17, 1
        %s198 = scalar_select %p197, %s17, 1
        %p199 = scmp.lt.s32.totalorder %s18, 0
        %s200 = scalar_select %p199, %s18, 0
        %s201 = sadd.s32 %s200, %s198
        %s202 = smul.addr %s201, 8
        %s203 = scalar_lea.vmem %s2, %s202
      $region32: #{tpu_custom_call.1} parent=19 // pred_fallthru
        _
    $region20: #{tpu_custom_call.1} parent=5 // pred_fallthru
      _
    %p204 = scmp.le.s32.totalorder 1, %s10
    %p205 = scmp.lt.s32.totalorder %s10, 3
    %p206 = pnand %p204, %p205
    %p207 = pneg %p206
    // Predicated region
    $region33: #{tpu_custom_call.1} parent=5 // pred_check
      _
    $region34: #{tpu_custom_call.1} parent=5 // pred_check_branch
      %209 = sbr.rel (%p206) target = $region36
    $region35: #{tpu_custom_call.1} parent=5 // pred_region
      %s210 = ssub.s32 %s10, 1
      %p211 = scmp.lt.s32.totalorder %s19, 1
      %s212 = scalar_select %p211, %s19, 1
      %s213 = smul.addr %s212, 8
      %s214 = scalar_lea.vmem %s0, %s213
      %p215 = pneg %p48
      %p216 = pneg %p45
      %p217 = scmp.lt.s32.totalorder %s19, 1
      %s218 = scalar_select %p217, %s19, 1
      %s219 = smul.addr %s218, 8
      %s220 = scalar_lea.vmem %s1, %s219
      %p221 = pneg %p74
      %p222 = pneg %p71
      %p223 = scmp.lt.s32.totalorder %s19, 1
      %s224 = scalar_select %p223, %s19, 1
      %p225 = scmp.lt.s32.totalorder %s20, 0
      %s226 = scalar_select %p225, %s20, 0
      %s227 = sadd.s32 %s226, %s224
      %s228 = smul.addr %s227, 8
      %s229 = scalar_lea.vmem %s2, %s228
      %p230 = pneg %p102
      %p231 = pneg %p99
      %p232 = scmp.lt.s32.totalorder %s20, 0
      %s233 = scalar_select %p232, %s20, 0
      %s234 = smul.addr %s233, 8
      %s235 = scalar_lea.vmem %s3, %s234
      %p236 = pneg %p128
      %p237 = pneg %p125
      %p238 = pneg %p154
      %p239 = pneg %p151
      %p240 = scmp.lt.s32.totalorder %s19, 1
      %s241 = scalar_select %p240, %s19, 1
      %s242 = smul.addr %s241, 8
      %s243 = scalar_lea.vmem %s4, %s242
      %p244 = scmp.lt.s32.totalorder %s19, 1
      %s245 = scalar_select %p244, %s19, 1
      %s246 = smul.addr %s245, 8
      %s247 = scalar_lea.vmem %s0, %s246
      %p248 = scmp.lt.s32.totalorder %s19, 1
      %s249 = scalar_select %p248, %s19, 1
      %s250 = smul.addr %s249, 8
      %s251 = scalar_lea.vmem %s1, %s250
      %p252 = scmp.lt.s32.totalorder %s19, 1
      %s253 = scalar_select %p252, %s19, 1
      %p254 = scmp.lt.s32.totalorder %s20, 0
      %s255 = scalar_select %p254, %s20, 0
      %s256 = sadd.s32 %s255, %s253
      %s257 = smul.addr %s256, 8
      %s258 = scalar_lea.vmem %s2, %s257
      %p259 = scmp.lt.s32.totalorder %s20, 0
      %s260 = scalar_select %p259, %s20, 0
      %s261 = smul.addr %s260, 8
      %s262 = scalar_lea.vmem %s3, %s261
      %p263 = scmp.lt.s32.totalorder %s19, 1
      %s264 = scalar_select %p263, %s19, 1
      %s265 = smul.addr %s264, 8
      %s266 = scalar_lea.vmem %s4, %s265
      %p267 = scmp.eq.s32.totalorder %s20, 0
      // Predicated region
      $region37: #{tpu_custom_call.1} parent=35 // pred_check
        %p268 = pneg %p267
      $region38: #{tpu_custom_call.1} parent=35 // pred_check_branch
        %270 = sbr.rel (%p268) target = $region40
      $region39: #{tpu_custom_call.1} parent=35 // pred_region
        %271 = vst [vmem:[#allocation2] sm:$0xff] 0.0
      $region40: #{tpu_custom_call.1} parent=35 // pred_fallthru
        _
      %v272 = vld [vmem:[%s247] sm:$0xff]
      %v273 = vld [vmem:[%s251] sm:$0xff]
      %v274 = vld [vmem:[%s258] sm:$0x3f]
      %v275 = vld [vmem:[%s262] sm:$0xff]
      %v276 = vld [vmem:[%s262 + $0x8] sm:$0xf]
      %vm277 = vcmp.gt.f32.partialorder %v276, 0.0
      %279 = vset.pattern.permute.xlu0 2
      %280 = vperm.xlu0 %279, %v272
      %v281 = vpop.permute.xlu0 %280
      %v283 = vlaneseq
      %v284 = vshrl.u32 %v283, 7
      %v285 = vsub.s32 2, %v284
      %v286 = vrot.slane %v275, %v285
      %v287 = vmin.f32 %v281, %v286
      %288 = vset.pattern.permute.xlu0 0
      %289 = vperm.xlu0 %288, %v272
      %v290 = vpop.permute.xlu0 %289
      %v292 = vlaneseq
      %v293 = vshrl.u32 %v292, 7
      %v294 = vsub.s32 0, %v293
      %v295 = vrot.slane %v275, %v294
      %v296 = vmax.f32 %v290, %v295
      %v297 = vsub.f32 %v287, %v296
      %v298 = vmax.f32 %v297, 0.0
      %299 = vset.pattern.permute.xlu0 3
      %300 = vperm.xlu0 %299, %v272
      %v301 = vpop.permute.xlu0 %300
      %v303 = vlaneseq
      %v304 = vshrl.u32 %v303, 7
      %v305 = vsub.s32 3, %v304
      %v306 = vrot.slane %v275, %v305
      %v307 = vmin.f32 %v301, %v306
      %308 = vset.pattern.permute.xlu0 1
      %309 = vperm.xlu0 %308, %v272
      %v310 = vpop.permute.xlu0 %309
      %v312 = vlaneseq
      %v313 = vshrl.u32 %v312, 7
      %v314 = vsub.s32 1, %v313
      %v315 = vrot.slane %v275, %v314
      %v316 = vmax.f32 %v310, %v315
      %v317 = vsub.f32 %v307, %v316
      %v318 = vmax.f32 %v317, 0.0
      %v319 = vmul.f32 %v298, %v318
      %320 = vrot.lane.b32.xlu0 %v272, 2
      %v321 = vpop.permute.xlu0 %320
      %v323 = vsub.f32 %v272, %v321
      %325 = vrot.lane.b32.xlu0 %v323, 127
      %v326 = vpop.permute.xlu0 %325
      %v328 = vmul.f32 %v323, %v326
      %330 = vset.pattern.permute.xlu0 2
      %331 = vperm.xlu0 %330, %v328
      %v332 = vpop.permute.xlu0 %331
      %v334 = vlaneseq
      %v335 = vshrl.u32 %v334, 7
      %v336 = vsub.s32 4, %v335
      %v337 = vrot.slane %v275, %v336
      %v338 = vadd.f32 %v332, %v337
      %v339 = vsub.f32 %v338, %v319
      %v340 = vmax.f32 %v339, 1e-20
      %v341 = vrcp.pop %v340
      %v342 = vmul.f32 %v319, %v341
      %vm343 = vcmp.ge.s32.totalorder %v273, 0
      %v344 = vsel %vm343, 1, 0
      %345 = vset.pattern.permute.xlu0 0
      %346 = vperm.xlu0 %345, %v344
      %v347 = vpop.permute.xlu0 %346
      %vm348 = vcmp.eq.s32.totalorder %v347, 1
      %v349 = vsel %vm348, %v342, -1.0
      %v350 = vrot.slane %v349, 4
      %v351 = vmax.f32 %v349, %v350
      %v352 = vrot.slane %v351, 2
      %v353 = vmax.f32 %v351, %v352
      %v354 = vrot.slane %v353, 1
      %v355 = vmax.f32 %v353, %v354
      %v356 = vsub.f32 %v355, %v349
      %v357 = vand.u32 2147483647, %v356
      %vm358 = vcmp.lt.f32.partialorder %v357, 1e-06
      %vm359 = vcmp.gt.f32.partialorder %v349, 0.5
      %vm360 = vmand %vm358, %vm359
      %v361 = vsel %vm277, 1, 0
      %v362 = vlaneseq
      %v363 = vshrl.u32 %v362, 7
      %v364 = vsub.s32 3, %v363
      %v365 = vrot.slane %v361, %v364
      %vm366 = vcmp.eq.s32.totalorder %v365, 1
      %vm367 = vmand %vm360, %vm366
      %vm368 = vcmp.lt.f32.partialorder %v355, 0.5
      %vm369 = vmand %vm368, %vm277
      %370 = vrot.lane.b32.xlu0 %v272, 126
      %v371 = vpop.permute.xlu0 %370
      %v373 = vadd.f32 %v272, %v371
      %v374 = vmul.f32 %v373, 0.5
      %v375 = vmax.f32 %v323, 1e-12
      %v376 = vlog2.pop %v375
      %v377 = vmul.f32 %v376, 0.6931472
      %v378 = vmul.f32 %v377, 5.0
      %380 = vset.pattern.permute.xlu0 0
      %381 = vperm.xlu0 %380, %v374
      %v382 = vpop.permute.xlu0 %381
      %v384 = vlaneseq
      %v385 = vshrl.u32 %v384, 7
      %v386 = vsub.s32 5, %v385
      %v387 = vrot.slane %v275, %v386
      %v388 = vsub.f32 %v382, %v387
      %v389 = vlaneseq
      %v390 = vshrl.u32 %v389, 7
      %v391 = vsub.s32 7, %v390
      %v392 = vrot.slane %v275, %v391
      %v393 = vmul.f32 %v388, %v392
      %394 = vset.pattern.permute.xlu0 1
      %395 = vperm.xlu0 %394, %v374
      %v396 = vpop.permute.xlu0 %395
      %v398 = vlaneseq
      %v399 = vshrl.u32 %v398, 7
      %v400 = vsub.s32 6, %v399
      %v401 = vrot.slane %v275, %v400
      %v402 = vsub.f32 %v396, %v401
      %v403 = vlaneseq
      %v404 = vshrl.u32 %v403, 7
      %v405 = vsub.s32 0, %v404
      %v406 = vrot.slane %v276, %v405
      %v407 = vmul.f32 %v402, %v406
      %409 = vset.pattern.permute.xlu0 2
      %410 = vperm.xlu0 %409, %v378
      %v411 = vpop.permute.xlu0 %410
      %v413 = vlaneseq
      %v414 = vshrl.u32 %v413, 7
      %v415 = vsub.s32 1, %v414
      %v416 = vrot.slane %v276, %v415
      %v417 = vsub.f32 %v411, %v416
      %418 = vset.pattern.permute.xlu0 3
      %419 = vperm.xlu0 %418, %v378
      %v420 = vpop.permute.xlu0 %419
      %v422 = vlaneseq
      %v423 = vshrl.u32 %v422, 7
      %v424 = vsub.s32 2, %v423
      %v425 = vrot.slane %v276, %v424
      %v426 = vsub.f32 %v420, %v425
      %v427 = vlaneseq
      %v428 = vshrl.u32 %v427, 7
      %v429 = vsub.s32 0, %v428
      %v430 = vrot.slane %v274, %v429
      %v431 = vsub.f32 %v430, %v393
      %v432 = vand.u32 2147483647, %v431
      %vm433 = vcmp.lt.f32.partialorder %v432, 1.0
      %v434 = vmul.f32 %v431, 0.5
      %v435 = vmul.f32 %v434, %v431
      %v436 = vsub.f32 %v432, 0.5
      %v437 = vsel %vm433, %v435, %v436
      %v438 = vlaneseq
      %v439 = vshrl.u32 %v438, 7
      %v440 = vsub.s32 1, %v439
      %v441 = vrot.slane %v274, %v440
      %v442 = vsub.f32 %v441, %v407
      %v443 = vand.u32 2147483647, %v442
      %vm444 = vcmp.lt.f32.partialorder %v443, 1.0
      %v445 = vmul.f32 %v442, 0.5
      %v446 = vmul.f32 %v445, %v442
      %v447 = vsub.f32 %v443, 0.5
      %v448 = vsel %vm444, %v446, %v447
      %v449 = vadd.f32 %v437, %v448
      %v450 = vlaneseq
      %v451 = vshrl.u32 %v450, 7
      %v452 = vsub.s32 2, %v451
      %v453 = vrot.slane %v274, %v452
      %v454 = vsub.f32 %v453, %v417
      %v455 = vand.u32 2147483647, %v454
      %vm456 = vcmp.lt.f32.partialorder %v455, 1.0
      %v457 = vmul.f32 %v454, 0.5
      %v458 = vmul.f32 %v457, %v454
      %v459 = vsub.f32 %v455, 0.5
      %v460 = vsel %vm456, %v458, %v459
      %v461 = vadd.f32 %v449, %v460
      %v462 = vlaneseq
      %v463 = vshrl.u32 %v462, 7
      %v464 = vsub.s32 3, %v463
      %v465 = vrot.slane %v274, %v464
      %v466 = vsub.f32 %v465, %v426
      %v467 = vand.u32 2147483647, %v466
      %vm468 = vcmp.lt.f32.partialorder %v467, 1.0
      %v469 = vmul.f32 %v466, 0.5
      %v470 = vmul.f32 %v469, %v466
      %v471 = vsub.f32 %v467, 0.5
      %v472 = vsel %vm468, %v470, %v471
      %v473 = vadd.f32 %v461, %v472
      %v474 = vsel %vm367, %v473, 0.0
      %v475 = vrot.slane %v474, 4
      %v476 = vadd.f32 %v474, %v475
      %v477 = vrot.slane %v476, 2
      %v478 = vadd.f32 %v476, %v477
      %v479 = vrot.slane %v478, 1
      %v480 = vadd.f32 %v478, %v479
      %v481 = vsel %vm367, 1, 0
      %v482 = vcvt.s32.f32 %v481
      %v483 = vrot.slane %v482, 4
      %v484 = vadd.f32 %v482, %v483
      %v485 = vrot.slane %v484, 2
      %v486 = vadd.f32 %v484, %v485
      %v487 = vrot.slane %v486, 1
      %v488 = vadd.f32 %v486, %v487
      %v490 = vrot.slane %v274, 1
      %v492 = vmax.f32 %v274, %v490
      %v493 = vsub.f32 %v274, %v490
      %v494 = vand.u32 2147483647, %v493
      %v495 = vsub.f32 0.0, %v494
      %v496 = vmul.f32 %v495, 1.442695
      %v497 = vpow.pop %v496
      %v498 = vadd.f32 %v497, 1.0
      %v499 = vlog2.pop %v498
      %v500 = vmul.f32 %v499, 0.6931472
      %v501 = vmul.f32 -0.5, %v497
      %v502 = vadd.f32 %v501, 1.0
      %v503 = vmul.f32 %v502, %v497
      %v504 = vand.u32 2147483647, %v497
      %vm505 = vcmp.lt.f32.partialorder %v504, 0.0004427343
      %v506 = vsel %vm505, %v503, %v500
      %v507 = vadd.f32 %v492, %v506
      %v508 = vsub.f32 %v274, %v507
      %v510 = vrot.slane %v507, 7
      %v512 = vsub.f32 %v274, %v510
      %vm513 = vcmp.eq.s32.totalorder %v273, 1
      %v514 = vsub.f32 0.0, %v512
      %v515 = vsub.f32 0.0, %v508
      %v516 = vsel %vm513, 1, 0
      %517 = vset.pattern.permute.xlu0 0
      %518 = vperm.xlu0 %517, %v516
      %v519 = vpop.permute.xlu0 %518
      %vm520 = vcmp.eq.s32.totalorder %v519, 1
      %v521 = vlaneseq
      %v522 = vshrl.u32 %v521, 7
      %v523 = vsub.s32 5, %v522
      %v524 = vrot.slane %v514, %v523
      %v525 = vlaneseq
      %v526 = vshrl.u32 %v525, 7
      %v527 = vsub.s32 4, %v526
      %v528 = vrot.slane %v515, %v527
      %v529 = vsel %vm520, %v524, %v528
      %v530 = vsel %vm513, 4.0, 1.0
      %532 = vset.pattern.permute.xlu0 0
      %533 = vperm.xlu0 %532, %v530
      %v534 = vpop.permute.xlu0 %533
      %v536 = vmul.f32 %v534, %v529
      %v537 = vsel %vm367, %v536, 0.0
      %v538 = vrot.slane %v537, 4
      %v539 = vadd.f32 %v537, %v538
      %v540 = vrot.slane %v539, 2
      %v541 = vadd.f32 %v539, %v540
      %v542 = vrot.slane %v541, 1
      %v543 = vadd.f32 %v541, %v542
      %v544 = vsel %vm367, %v534, 0.0
      %v545 = vrot.slane %v544, 4
      %v546 = vadd.f32 %v544, %v545
      %v547 = vrot.slane %v546, 2
      %v548 = vadd.f32 %v546, %v547
      %v549 = vrot.slane %v548, 1
      %v550 = vadd.f32 %v548, %v549
      %v551 = vsel %vm369, 1, 0
      %v552 = vcvt.s32.f32 %v551
      %v554 = vrot.slane %v515, 1
      %v556 = vsel %vm369, %v554, 0.0
      %v557 = vadd.f32 %v543, %v556
      %v558 = vadd.f32 %v550, %v552
      %v559 = vld [vmem:[#allocation2] sm:$0x1]
      %v560 = vadd.f32 %v559, %v480
      %561 = vst [vmem:[#allocation2] sm:$0x1] %v560
      %v562 = vld [vmem:[#allocation2 + $0x1] sm:$0x1]
      %v563 = vadd.f32 %v562, %v488
      %564 = vst [vmem:[#allocation2 + $0x1] sm:$0x1] %v563
      %v565 = vld [vmem:[#allocation2 + $0x2] sm:$0x1]
      %v567 = vrot.slane %v557, 3
      %v569 = vadd.f32 %v565, %v567
      %570 = vst [vmem:[#allocation2 + $0x2] sm:$0x1] %v569
      %v571 = vld [vmem:[#allocation2 + $0x3] sm:$0x1]
      %v573 = vrot.slane %v558, 3
      %v575 = vadd.f32 %v571, %v573
      %576 = vst [vmem:[#allocation2 + $0x3] sm:$0x1] %v575
      %v577 = vld [vmem:[#allocation2 + $0x4] sm:$0x1]
      %v579 = vrot.slane %v552, 3
      %v581 = vadd.f32 %v577, %v579
      %582 = vst [vmem:[#allocation2 + $0x4] sm:$0x1] %v581
      // Predicated region
      $region41: #{tpu_custom_call.1} parent=35 // pred_check
        %p583 = pneg %p267
      $region42: #{tpu_custom_call.1} parent=35 // pred_check_branch
        %585 = sbr.rel (%p583) target = $region44
      $region43: #{tpu_custom_call.1} parent=35 // pred_region
        %v586 = vld [vmem:[#allocation2] sm:$0xff]
        %587 = vadd.xlane.f32.xlu0 %v586
        %v588 = vpop.xlane.xlu0 %587
        %vm589 = vcmask 7168
        %590 = vst.msk [vmem:[%s266] sm:$0xff] %vm589, %v588
      $region44: #{tpu_custom_call.1} parent=35 // pred_fallthru
        _
      %p591 = scmp.lt.s32.totalorder %s19, 1
      %s592 = scalar_select %p591, %s19, 1
      %s593 = smul.addr %s592, 8
      %s594 = scalar_lea.vmem %s4, %s593
      // Predicated region
      $region45: #{tpu_custom_call.1} parent=35 // pred_check
        %p595 = pneg %p151
      $region46: #{tpu_custom_call.1} parent=35 // pred_check_branch
        %597 = sbr.rel (%p595) target = $region48
      $region47: #{tpu_custom_call.1} parent=35 // pred_region
        _
      $region48: #{tpu_custom_call.1} parent=35 // pred_fallthru
        _
    $region36: #{tpu_custom_call.1} parent=5 // pred_fallthru
      _
    %p598 = scmp.le.s32.totalorder 2, %s10
    // Predicated region
    $region49: #{tpu_custom_call.1} parent=5 // pred_check
      %p599 = pneg %p598
    $region50: #{tpu_custom_call.1} parent=5 // pred_check_branch
      %601 = sbr.rel (%p599) target = $region52
    $region51: #{tpu_custom_call.1} parent=5 // pred_region
      %s602 = ssub.s32 %s10, 2
      // Predicated region
      $region53: #{tpu_custom_call.1} parent=51 // pred_check
        %p603 = pneg %p157
      $region54: #{tpu_custom_call.1} parent=51 // pred_check_branch
        %605 = sbr.rel (%p603) target = $region56
      $region55: #{tpu_custom_call.1} parent=51 // pred_region
        %p606 = scmp.lt.s32.totalorder %s21, 1
        %s607 = scalar_select %p606, %s21, 1
        %s608 = smul.addr %s607, 8
        %s609 = scalar_lea.vmem %s4, %s608
      $region56: #{tpu_custom_call.1} parent=51 // pred_fallthru
        _
    $region52: #{tpu_custom_call.1} parent=5 // pred_fallthru
      _
  $region6: #{tpu_custom_call.1} parent=0 // loop_footer
    %s14 = sadd.s32 1, %s10
  $region7: #{tpu_custom_call.1} parent=0 // loop_footer_branch
    %9 = sbr.rel target = $region3
  $region8: #{tpu_custom_call.1} parent=0 // loop_exit
    _

</llo_original>
